<compile_context>
chip_gen: v5e
topology: v5e:2x2
jax: 0.10.0
libtpu: 0.0.40
codegen_flags: <defaults>
</compile_context>

<pallas_src>
import jax
import jax.numpy as jnp
from jax import lax
from jax.experimental import pallas as pl
from jax.experimental.pallas import tpu as pltpu

NEG_SLOPE = 0.2  # LeakyReLU alpha from the Discriminator spec


def _leaky_relu(y):
    return jnp.where(y > 0, y, NEG_SLOPE * y)


def discriminator_kernel(x_ref,
                         w1_ref, b1_ref,
                         w2_ref, b2_ref,
                         w3_ref, b3_ref,
                         w4_ref, b4_ref,
                         o_ref):
    # Weights arrive pre-transposed to (Fin, Fout): every layer is a plain
    # [M,K]x[K,N] MXU matmul, accumulated in f32.
    def linear(h, w_ref, b_ref):
        y = jnp.dot(h, w_ref[...],
                    preferred_element_type=jnp.float32,
                    precision=lax.Precision.HIGHEST)   # true-f32 (PyTorch parity)
        return y + b_ref[...]                          # (1, Fout) bias broadcasts

    h = x_ref[...].astype(jnp.float32)
    h = _leaky_relu(linear(h, w1_ref, b1_ref))
    h = _leaky_relu(linear(h, w2_ref, b2_ref))
    h = _leaky_relu(linear(h, w3_ref, b3_ref))
    # Final Linear(hid, 1): (tb, 1) tile written straight into the (N, 1) output.
    o_ref[...] = linear(h, w4_ref, b4_ref).astype(o_ref.dtype)


def _round_up(a, m):
    return ((a + m - 1) // m) * m


def _vmem_bytes_estimate(tb, fin, dims_out):
    """Rough per-step VMEM need (f32, default double buffering everywhere)."""
    f32 = 4
    x_tile = 2 * tb * fin * f32              # input tile, double buffered
    out_tile = 2 * tb * 1 * f32              # output tile, double buffered (tiny)
    w_bytes = 0
    prev = fin
    for d in dims_out:
        w_bytes += (prev * d + d) * f32      # weight + bias
        prev = d
    w_bytes *= 2                             # default double buffering of residents
    acts = tb * sum(dims_out) * f32          # live f32 activations
    return x_tile + out_tile + w_bytes + acts


def discriminator_forward(x, params, *, block_batch=512):
    """Fused Discriminator forward.

    x: (N, in_features) f32
    params: w1..w4 in PyTorch (Fout, Fin) layout, b1..b4 of shape (Fout,).
    Returns (N, 1) f32.
    """
    w1, b1 = params["w1"], params["b1"]
    w2, b2 = params["w2"], params["b2"]
    w3, b3 = params["w3"], params["b3"]
    w4, b4 = params["w4"], params["b4"]

    n, fin = x.shape
    h4, h2, h1 = w1.shape[0], w2.shape[0], w3.shape[0]
    assert w1.shape[1] == fin and w2.shape[1] == h4 and w3.shape[1] == h2
    assert w4.shape == (1, h1)
    dims_out = (h4, h2, h1, 1)

    # One-time wrapper transpose to (Fin, Fout).  Weights have constant index maps
    # (grid-resident), so this is a single pass over the weights instead of one
    # in-kernel transpose per batch tile.
    w1t, w2t, w3t, w4t = w1.T, w2.T, w3.T, w4.T
    b1r, b2r, b3r, b4r = (b.reshape(1, -1) for b in (b1, b2, b3, b4))

    # ---- batch-tile selection -------------------------------------------------
    if n <= 256:
        tb = n                                             # single tile; block == array
    else:
        # >= 2 tiles so v7x's two TensorCores both get work; rows multiple of 8.
        tb = min(block_batch, _round_up(pl.cdiv(n, 2), 8))
        # Shrink until the per-step VMEM estimate fits a v7x-safe (64 MiB) budget.
        while tb > 256 and _vmem_bytes_estimate(tb, fin, dims_out) > 40 * 1024 * 1024:
            tb //= 2
    num_tiles = pl.cdiv(n, tb)
    grid = (num_tiles,)

    # Explicit VMEM limit: v5e default scoped limit is 16 MiB, v6e/v7x 32 MiB;
    # raise it (capped at v7x's 64 MiB physical) so large tiles always compile.
    vmem_limit = int(min(max(2 * _vmem_bytes_estimate(tb, fin, dims_out),
                             32 * 1024 * 1024),
                         64 * 1024 * 1024))

    def resident(arr):
        # Constant index map -> fetched once, resident in VMEM for the whole grid.
        # (pipeline_mode=pl.Buffered(1) would halve the weight footprint on v7x;
        #  kept at the portable default here.)
        return pl.BlockSpec(arr.shape, lambda i: (0, 0))

    out = pl.pallas_call(
        discriminator_kernel,
        out_shape=jax.ShapeDtypeStruct((n, 1), jnp.float32),
        grid=grid,
        in_specs=[
            pl.BlockSpec((tb, fin), lambda i: (i, 0)),     # x tiled over batch
            resident(w1t), resident(b1r),
            resident(w2t), resident(b2r),
            resident(w3t), resident(b3r),
            resident(w4t), resident(b4r),
        ],
        out_specs=pl.BlockSpec((tb, 1), lambda i: (i, 0)),
        compiler_params=pltpu.CompilerParams(
            dimension_semantics=("parallel",),             # independent batch tiles
            vmem_limit_bytes=vmem_limit,
        ),
    )(x, w1t, b1r, w2t, b2r, w3t, b3r, w4t, b4r)

    return out


def reference(x, params):
    hp = lax.Precision.HIGHEST
    def lin(h, w, b):
        return jnp.dot(h, w.T, precision=hp) + b
    h = jax.nn.leaky_relu(lin(x, params["w1"], params["b1"]), NEG_SLOPE)
    h = jax.nn.leaky_relu(lin(h, params["w2"], params["b2"]), NEG_SLOPE)
    h = jax.nn.leaky_relu(lin(h, params["w3"], params["b3"]), NEG_SLOPE)
    return lin(h, params["w4"], params["b4"])


def _init_linear(key, fout, fin):
    kw, kb = jax.random.split(key)
    bound = 1.0 / jnp.sqrt(jnp.float32(fin))
    w = jax.random.uniform(kw, (fout, fin), minval=-bound, maxval=bound,
                           dtype=jnp.float32)
    b = jax.random.uniform(kb, (fout,), minval=-bound, maxval=bound,
                           dtype=jnp.float32)
    return w, b


if __name__ == "__main__":
    key = jax.random.PRNGKey(0)
    batch, in_features, hid_features = 8, 16, 32
    dims = [in_features, 4 * hid_features, 2 * hid_features, hid_features, 1]

    kx, k1, k2, k3, k4, kx2 = jax.random.split(key, 6)
    x = jax.random.normal(kx, (batch, in_features), dtype=jnp.float32)

    w1, b1 = _init_linear(k1, dims[1], dims[0])
    w2, b2 = _init_linear(k2, dims[2], dims[1])
    w3, b3 = _init_linear(k3, dims[3], dims[2])
    w4, b4 = _init_linear(k4, dims[4], dims[3])
    params = dict(w1=w1, b1=b1, w2=w2, b2=b2, w3=w3, b3=b3, w4=w4, b4=b4)

    # Small single-tile case.
    out = jax.block_until_ready(discriminator_forward(x, params))
    ref = reference(x, params)
    assert out.shape == (batch, 1)
    assert jnp.allclose(out, ref, atol=1e-4, rtol=1e-4), "mismatch vs reference (small)"

    # Multi-tile ragged case (exercises the grid/ragged-last-tile path).
    x2 = jax.random.normal(kx2, (300, in_features), dtype=jnp.float32)
    out2 = jax.block_until_ready(discriminator_forward(x2, params))
    ref2 = reference(x2, params)
    assert out2.shape == (300, 1)
    assert jnp.allclose(out2, ref2, atol=1e-4, rtol=1e-4), "mismatch vs reference (tiled)"

    print("KERNEL_OK")
</pallas_src>

<mosaic_0001>
module attributes {stable_mosaic.version = 11 : i64} {
  func.func @discriminator_kernel(%arg0: i32, %arg1: memref<8x16xf32, #tpu.memory_space<vmem>>, %arg2: memref<16x128xf32, #tpu.memory_space<vmem>>, %arg3: memref<1x128xf32, #tpu.memory_space<vmem>>, %arg4: memref<128x64xf32, #tpu.memory_space<vmem>>, %arg5: memref<1x64xf32, #tpu.memory_space<vmem>>, %arg6: memref<64x32xf32, #tpu.memory_space<vmem>>, %arg7: memref<1x32xf32, #tpu.memory_space<vmem>>, %arg8: memref<32x1xf32, #tpu.memory_space<vmem>>, %arg9: memref<1x1xf32, #tpu.memory_space<vmem>>, %arg10: memref<8x1xf32, #tpu.memory_space<vmem>>) attributes {dimension_semantics = [#tpu.dimension_semantics<parallel>], iteration_bounds = array<i64: 1>, scalar_prefetch = 0 : i64, scratch_operands = 0 : i64, tpu.core_type = #tpu.core_type<tc>, window_params = [{transform_indices = @transform_0, window_bounds = array<i64: 8, 16>}, {pipeline_mode = #tpu.pipeline_mode<synchronous>, transform_indices = @transform_1, window_bounds = array<i64: 16, 128>}, {pipeline_mode = #tpu.pipeline_mode<synchronous>, transform_indices = @transform_2, window_bounds = array<i64: 1, 128>}, {pipeline_mode = #tpu.pipeline_mode<synchronous>, transform_indices = @transform_3, window_bounds = array<i64: 128, 64>}, {pipeline_mode = #tpu.pipeline_mode<synchronous>, transform_indices = @transform_4, window_bounds = array<i64: 1, 64>}, {pipeline_mode = #tpu.pipeline_mode<synchronous>, transform_indices = @transform_5, window_bounds = array<i64: 64, 32>}, {pipeline_mode = #tpu.pipeline_mode<synchronous>, transform_indices = @transform_6, window_bounds = array<i64: 1, 32>}, {pipeline_mode = #tpu.pipeline_mode<synchronous>, transform_indices = @transform_7, window_bounds = array<i64: 32, 1>}, {pipeline_mode = #tpu.pipeline_mode<synchronous>, transform_indices = @transform_8, window_bounds = array<i64: 1, 1>}, {transform_indices = @transform_9, window_bounds = array<i64: 8, 1>}]} {
    %c0 = arith.constant 0 : index
    %c0_0 = arith.constant 0 : index
    %0 = vector.load %arg1[%c0, %c0_0] : memref<8x16xf32, #tpu.memory_space<vmem>>, vector<8x16xf32>
    %c0_1 = arith.constant 0 : index
    %c0_2 = arith.constant 0 : index
    %1 = vector.load %arg2[%c0_1, %c0_2] : memref<16x128xf32, #tpu.memory_space<vmem>>, vector<16x128xf32>
    %cst = arith.constant dense<0.000000e+00> : vector<8x128xf32>
    %2 = tpu.matmul %0, %1, %cst {dimension_numbers = #tpu.dot_dimension_numbers<[1], [0], [0], [1], [0, 0, 1, 1], [], []>, precision = #tpu.contract_precision<fp32>} : vector<8x16xf32>, vector<16x128xf32>, vector<8x128xf32> -> vector<8x128xf32>
    %c0_3 = arith.constant 0 : index
    %c0_4 = arith.constant 0 : index
    %3 = vector.load %arg3[%c0_3, %c0_4] : memref<1x128xf32, #tpu.memory_space<vmem>>, vector<1x128xf32>
    %4 = vector.broadcast %3 : vector<1x128xf32> to vector<8x128xf32>
    %5 = arith.addf %2, %4 : vector<8x128xf32>
    %cst_5 = arith.constant 0.000000e+00 : f32
    %6 = vector.broadcast %cst_5 : f32 to vector<8x128xf32>
    %7 = arith.cmpf ogt, %5, %6 : vector<8x128xf32>
    %cst_6 = arith.constant 2.000000e-01 : f32
    %8 = vector.broadcast %cst_6 : f32 to vector<8x128xf32>
    %9 = arith.mulf %8, %5 : vector<8x128xf32>
    %10 = arith.select %7, %5, %9 : vector<8x128xi1>, vector<8x128xf32>
    %c0_7 = arith.constant 0 : index
    %c0_8 = arith.constant 0 : index
    %11 = vector.load %arg4[%c0_7, %c0_8] : memref<128x64xf32, #tpu.memory_space<vmem>>, vector<128x64xf32>
    %cst_9 = arith.constant dense<0.000000e+00> : vector<8x64xf32>
    %12 = tpu.matmul %10, %11, %cst_9 {dimension_numbers = #tpu.dot_dimension_numbers<[1], [0], [0], [1], [0, 0, 1, 1], [], []>, precision = #tpu.contract_precision<fp32>} : vector<8x128xf32>, vector<128x64xf32>, vector<8x64xf32> -> vector<8x64xf32>
    %c0_10 = arith.constant 0 : index
    %c0_11 = arith.constant 0 : index
    %13 = vector.load %arg5[%c0_10, %c0_11] : memref<1x64xf32, #tpu.memory_space<vmem>>, vector<1x64xf32>
    %14 = vector.broadcast %13 : vector<1x64xf32> to vector<8x64xf32>
    %15 = arith.addf %12, %14 : vector<8x64xf32>
    %cst_12 = arith.constant 0.000000e+00 : f32
    %16 = vector.broadcast %cst_12 : f32 to vector<8x64xf32>
    %17 = arith.cmpf ogt, %15, %16 : vector<8x64xf32>
    %cst_13 = arith.constant 2.000000e-01 : f32
    %18 = vector.broadcast %cst_13 : f32 to vector<8x64xf32>
    %19 = arith.mulf %18, %15 : vector<8x64xf32>
    %20 = arith.select %17, %15, %19 : vector<8x64xi1>, vector<8x64xf32>
    %c0_14 = arith.constant 0 : index
    %c0_15 = arith.constant 0 : index
    %21 = vector.load %arg6[%c0_14, %c0_15] : memref<64x32xf32, #tpu.memory_space<vmem>>, vector<64x32xf32>
    %cst_16 = arith.constant dense<0.000000e+00> : vector<8x32xf32>
    %22 = tpu.matmul %20, %21, %cst_16 {dimension_numbers = #tpu.dot_dimension_numbers<[1], [0], [0], [1], [0, 0, 1, 1], [], []>, precision = #tpu.contract_precision<fp32>} : vector<8x64xf32>, vector<64x32xf32>, vector<8x32xf32> -> vector<8x32xf32>
    %c0_17 = arith.constant 0 : index
    %c0_18 = arith.constant 0 : index
    %23 = vector.load %arg7[%c0_17, %c0_18] : memref<1x32xf32, #tpu.memory_space<vmem>>, vector<1x32xf32>
    %24 = vector.broadcast %23 : vector<1x32xf32> to vector<8x32xf32>
    %25 = arith.addf %22, %24 : vector<8x32xf32>
    %cst_19 = arith.constant 0.000000e+00 : f32
    %26 = vector.broadcast %cst_19 : f32 to vector<8x32xf32>
    %27 = arith.cmpf ogt, %25, %26 : vector<8x32xf32>
    %cst_20 = arith.constant 2.000000e-01 : f32
    %28 = vector.broadcast %cst_20 : f32 to vector<8x32xf32>
    %29 = arith.mulf %28, %25 : vector<8x32xf32>
    %30 = arith.select %27, %25, %29 : vector<8x32xi1>, vector<8x32xf32>
    %c0_21 = arith.constant 0 : index
    %c0_22 = arith.constant 0 : index
    %31 = vector.load %arg8[%c0_21, %c0_22] : memref<32x1xf32, #tpu.memory_space<vmem>>, vector<32x1xf32>
    %cst_23 = arith.constant dense<0.000000e+00> : vector<8x1xf32>
    %32 = tpu.matmul %30, %31, %cst_23 {dimension_numbers = #tpu.dot_dimension_numbers<[1], [0], [0], [1], [0, 0, 1, 1], [], []>, precision = #tpu.contract_precision<fp32>} : vector<8x32xf32>, vector<32x1xf32>, vector<8x1xf32> -> vector<8x1xf32>
    %c0_24 = arith.constant 0 : index
    %c0_25 = arith.constant 0 : index
    %33 = vector.load %arg9[%c0_24, %c0_25] : memref<1x1xf32, #tpu.memory_space<vmem>>, vector<1x1xf32>
    %34 = vector.broadcast %33 : vector<1x1xf32> to vector<8x1xf32>
    %35 = arith.addf %32, %34 : vector<8x1xf32>
    %c0_26 = arith.constant 0 : index
    %c0_27 = arith.constant 0 : index
    %36 = vector.load %arg10[%c0_26, %c0_27] : memref<8x1xf32, #tpu.memory_space<vmem>>, vector<8x1xf32>
    tpu.vector_store %arg10[%c0_26, %c0_27], %35 {strides = array<i32>} : memref<8x1xf32, #tpu.memory_space<vmem>>, vector<8x1xf32>,
    return
  }
  func.func @transform_0(%arg0: i32) -> (i32, i32) {
    %c0_i32 = arith.constant 0 : i32
    %c0_i32_0 = arith.constant 0 : i32
    return %arg0, %c0_i32 : i32, i32
  }
  func.func @transform_1(%arg0: i32) -> (i32, i32) {
    %c0_i32 = arith.constant 0 : i32
    %c0_i32_0 = arith.constant 0 : i32
    %c0_i32_1 = arith.constant 0 : i32
    return %c0_i32, %c0_i32_0 : i32, i32
  }
  func.func @transform_2(%arg0: i32) -> (i32, i32) {
    %c0_i32 = arith.constant 0 : i32
    %c0_i32_0 = arith.constant 0 : i32
    %c0_i32_1 = arith.constant 0 : i32
    return %c0_i32, %c0_i32_0 : i32, i32
  }
  func.func @transform_3(%arg0: i32) -> (i32, i32) {
    %c0_i32 = arith.constant 0 : i32
    %c0_i32_0 = arith.constant 0 : i32
    %c0_i32_1 = arith.constant 0 : i32
    return %c0_i32, %c0_i32_0 : i32, i32
  }
  func.func @transform_4(%arg0: i32) -> (i32, i32) {
    %c0_i32 = arith.constant 0 : i32
    %c0_i32_0 = arith.constant 0 : i32
    %c0_i32_1 = arith.constant 0 : i32
    return %c0_i32, %c0_i32_0 : i32, i32
  }
  func.func @transform_5(%arg0: i32) -> (i32, i32) {
    %c0_i32 = arith.constant 0 : i32
    %c0_i32_0 = arith.constant 0 : i32
    %c0_i32_1 = arith.constant 0 : i32
    return %c0_i32, %c0_i32_0 : i32, i32
  }
  func.func @transform_6(%arg0: i32) -> (i32, i32) {
    %c0_i32 = arith.constant 0 : i32
    %c0_i32_0 = arith.constant 0 : i32
    %c0_i32_1 = arith.constant 0 : i32
    return %c0_i32, %c0_i32_0 : i32, i32
  }
  func.func @transform_7(%arg0: i32) -> (i32, i32) {
    %c0_i32 = arith.constant 0 : i32
    %c0_i32_0 = arith.constant 0 : i32
    %c0_i32_1 = arith.constant 0 : i32
    return %c0_i32, %c0_i32_0 : i32, i32
  }
  func.func @transform_8(%arg0: i32) -> (i32, i32) {
    %c0_i32 = arith.constant 0 : i32
    %c0_i32_0 = arith.constant 0 : i32
    %c0_i32_1 = arith.constant 0 : i32
    return %c0_i32, %c0_i32_0 : i32, i32
  }
  func.func @transform_9(%arg0: i32) -> (i32, i32) {
    %c0_i32 = arith.constant 0 : i32
    %c0_i32_0 = arith.constant 0 : i32
    return %arg0, %c0_i32 : i32, i32
  }
}

</mosaic_0001>

<llo_original>
// kernel: tpu_custom_call.1
$region0: #{tpu_custom_call.1}
  #allocation0 [shape = 'u32[]', space=smem, size = 0x4, offset = 0x4, fixed_abs, tag = 'smem constant byte address 0x4 - core index']
  #allocation1 [shape = 'u32[72,128]{1,0:T(1,128)}', space=vmem, size = 0x9000, scoped, tag = 'internal scratch']
  #allocation2 [shape = 'f32[1,1]{1,0:T(1,128)S(1)}', space=vmem, size = 0x200, scoped, tag = 'scoped memory for tpu_custom_call.1']
  %s0 = inlined_call_operand.vmem [shape: f32[8,16], index: 0, kind: input, shape index: {}]
  %s1 = inlined_call_operand.vmem [shape: f32[16,128], index: 1, kind: input, shape index: {}]
  %s2 = inlined_call_operand.vmem [shape: f32[1,128], index: 2, kind: input, shape index: {}]
  %s3 = inlined_call_operand.vmem [shape: f32[128,64], index: 3, kind: input, shape index: {}]
  %s4 = inlined_call_operand.vmem [shape: f32[1,64], index: 4, kind: input, shape index: {}]
  %s5 = inlined_call_operand.vmem [shape: f32[64,32], index: 5, kind: input, shape index: {}]
  %s6 = inlined_call_operand.vmem [shape: f32[1,32], index: 6, kind: input, shape index: {}]
  %s7 = inlined_call_operand.vmem [shape: f32[32,1], index: 7, kind: input, shape index: {}]
  %s8 = inlined_call_operand.<no memory space> [shape: f32[1,1], index: 8, kind: input, shape index: {}]
  %s9 = inlined_call_operand.vmem [shape: f32[8,1], index: 9, kind: output, shape index: {}]
  %s10 = sld [smem:[#allocation0]]
  $region46: #{tpu_custom_call.1} parent=0
    _
  %s12 = ssub.s32 1, %s10
  %s13 = scalar_select 0, %s12, %s10
  %v14 = vstv %s8
  %15 = vst [vmem:[#allocation2] sm:$0x1] %v14
  // Predicated region
  $region2: #{tpu_custom_call.1} parent=0 // pred_check
    _
  $region3: #{tpu_custom_call.1} parent=0 // pred_check_branch
    %17 = sbr.rel (0) target = $region5
  $region4: #{tpu_custom_call.1} parent=0 // pred_region
    _
  $region5: #{tpu_custom_call.1} parent=0 // pred_fallthru
    _
  // Predicated region
  $region6: #{tpu_custom_call.1} parent=0 // pred_check
    _
  $region7: #{tpu_custom_call.1} parent=0 // pred_check_branch
    %19 = sbr.rel (0) target = $region9
  $region8: #{tpu_custom_call.1} parent=0 // pred_region
    _
  $region9: #{tpu_custom_call.1} parent=0 // pred_fallthru
    _
  // Predicated region
  $region10: #{tpu_custom_call.1} parent=0 // pred_check
    _
  $region11: #{tpu_custom_call.1} parent=0 // pred_check_branch
    %21 = sbr.rel (0) target = $region13
  $region12: #{tpu_custom_call.1} parent=0 // pred_region
    _
  $region13: #{tpu_custom_call.1} parent=0 // pred_fallthru
    _
  // Predicated region
  $region14: #{tpu_custom_call.1} parent=0 // pred_check
    _
  $region15: #{tpu_custom_call.1} parent=0 // pred_check_branch
    %23 = sbr.rel (0) target = $region17
  $region16: #{tpu_custom_call.1} parent=0 // pred_region
    _
  $region17: #{tpu_custom_call.1} parent=0 // pred_fallthru
    _
  // Predicated region
  $region18: #{tpu_custom_call.1} parent=0 // pred_check
    _
  $region19: #{tpu_custom_call.1} parent=0 // pred_check_branch
    %25 = sbr.rel (0) target = $region21
  $region20: #{tpu_custom_call.1} parent=0 // pred_region
    _
  $region21: #{tpu_custom_call.1} parent=0 // pred_fallthru
    _
  // Predicated region
  $region22: #{tpu_custom_call.1} parent=0 // pred_check
    _
  $region23: #{tpu_custom_call.1} parent=0 // pred_check_branch
    %27 = sbr.rel (0) target = $region25
  $region24: #{tpu_custom_call.1} parent=0 // pred_region
    _
  $region25: #{tpu_custom_call.1} parent=0 // pred_fallthru
    _
  // Predicated region
  $region26: #{tpu_custom_call.1} parent=0 // pred_check
    _
  $region27: #{tpu_custom_call.1} parent=0 // pred_check_branch
    %29 = sbr.rel (0) target = $region29
  $region28: #{tpu_custom_call.1} parent=0 // pred_region
    _
  $region29: #{tpu_custom_call.1} parent=0 // pred_fallthru
    _
  // Predicated region
  $region30: #{tpu_custom_call.1} parent=0 // pred_check
    _
  $region31: #{tpu_custom_call.1} parent=0 // pred_check_branch
    %31 = sbr.rel (0) target = $region33
  $region32: #{tpu_custom_call.1} parent=0 // pred_region
    _
  $region33: #{tpu_custom_call.1} parent=0 // pred_fallthru
    _
  // Predicated region
  $region34: #{tpu_custom_call.1} parent=0 // pred_check
    _
  $region35: #{tpu_custom_call.1} parent=0 // pred_check_branch
    %33 = sbr.rel (0) target = $region37
  $region36: #{tpu_custom_call.1} parent=0 // pred_region
    _
  $region37: #{tpu_custom_call.1} parent=0 // pred_fallthru
    _
  %v34 = vld [vmem:[%s0] sm:$0xff]
  %v35 = vld [vmem:[%s1] sm:$0xff]
  %v36 = vld [vmem:[%s1 + $0x8] sm:$0xff]
  %v37 = vld [vmem:[%s2] sm:$0x1]
  %v39 = vperm.slane %v37, 0
  %vm41 = vcmask 130048
  %v43 = vsel %vm41, %v34, 0
  %45 = vmatpush.msra.mxu0 0.0
  %46 = vmatpush.msra.mxu0 0.0
  %47 = vmatpush.msra.mxu0 0.0
  %48 = vmatpush.msra.mxu0 0.0
  %49 = vmatpush.msra.mxu0 0.0
  %50 = vmatpush.msra.mxu0 0.0
  %51 = vmatpush.msra.mxu0 0.0
  %52 = vmatpush.msra.mxu0 0.0
  %53 = vmatpush.msra.mxu0 0.0
  %54 = vmatpush.msra.mxu0 0.0
  %55 = vmatpush.msra.mxu0 0.0
  %56 = vmatpush.msra.mxu0 0.0
  %57 = vmatpush.msra.mxu0 0.0
  %58 = vmatpush.msra.mxu0 0.0
  %v59 = vand.u32 %v36, 4294901760
  %60 = vmatpush.msra.mxu0 %v59
  %v61 = vand.u32 %v35, 4294901760
  %62 = vmatpush.msra.mxu0 %v61
  %v63 = vand.u32 %v43, 4294901760
  %v64 = vsub.f32 %v43, %v63
  %v65 = vand.u32 %v64, 4294901760
  %v66 = vsub.f32 %v64, %v65
  %v67 = vand.u32 %v66, 4294901760
  %68 = vmatmul.f32.gmra.mxu0 %v67
  %v69 = vpop.f32.mrf.mxu0
  %v70 = vadd.f32 %v39, %v69
  %71 = vdwg.mxu0
  %72 = vmatpush.msra.mxu0 0.0
  %73 = vmatpush.msra.mxu0 0.0
  %74 = vmatpush.msra.mxu0 0.0
  %75 = vmatpush.msra.mxu0 0.0
  %76 = vmatpush.msra.mxu0 0.0
  %77 = vmatpush.msra.mxu0 0.0
  %78 = vmatpush.msra.mxu0 0.0
  %79 = vmatpush.msra.mxu0 0.0
  %80 = vmatpush.msra.mxu0 0.0
  %81 = vmatpush.msra.mxu0 0.0
  %82 = vmatpush.msra.mxu0 0.0
  %83 = vmatpush.msra.mxu0 0.0
  %84 = vmatpush.msra.mxu0 0.0
  %85 = vmatpush.msra.mxu0 0.0
  %v86 = vand.u32 %v36, 4294901760
  %v87 = vsub.f32 %v36, %v86
  %v88 = vand.u32 %v87, 4294901760
  %v89 = vsub.f32 %v87, %v88
  %v90 = vand.u32 %v89, 4294901760
  %91 = vmatpush.msra.mxu0 %v90
  %v92 = vand.u32 %v35, 4294901760
  %v93 = vsub.f32 %v35, %v92
  %v94 = vand.u32 %v93, 4294901760
  %v95 = vsub.f32 %v93, %v94
  %v96 = vand.u32 %v95, 4294901760
  %97 = vmatpush.msra.mxu0 %v96
  %v98 = vand.u32 %v43, 4294901760
  %99 = vmatmul.f32.gmra.mxu0 %v98
  %v100 = vpop.f32.mrf.mxu0
  %v101 = vadd.f32 %v70, %v100
  %102 = vdwg.mxu0
  %103 = vmatpush.msra.mxu0 0.0
  %104 = vmatpush.msra.mxu0 0.0
  %105 = vmatpush.msra.mxu0 0.0
  %106 = vmatpush.msra.mxu0 0.0
  %107 = vmatpush.msra.mxu0 0.0
  %108 = vmatpush.msra.mxu0 0.0
  %109 = vmatpush.msra.mxu0 0.0
  %110 = vmatpush.msra.mxu0 0.0
  %111 = vmatpush.msra.mxu0 0.0
  %112 = vmatpush.msra.mxu0 0.0
  %113 = vmatpush.msra.mxu0 0.0
  %114 = vmatpush.msra.mxu0 0.0
  %115 = vmatpush.msra.mxu0 0.0
  %116 = vmatpush.msra.mxu0 0.0
  %v117 = vand.u32 %v36, 4294901760
  %v118 = vsub.f32 %v36, %v117
  %119 = vmatpush.msra.mxu0 %v118
  %v120 = vand.u32 %v35, 4294901760
  %v121 = vsub.f32 %v35, %v120
  %122 = vmatpush.msra.mxu0 %v121
  %v123 = vand.u32 %v43, 4294901760
  %v124 = vsub.f32 %v43, %v123
  %125 = vmatmul.f32.gmra.mxu0 %v124
  %v126 = vpop.f32.mrf.mxu0
  %v127 = vadd.f32 %v101, %v126
  %128 = vdwg.mxu0
  %129 = vmatpush.msra.mxu0 0.0
  %130 = vmatpush.msra.mxu0 0.0
  %131 = vmatpush.msra.mxu0 0.0
  %132 = vmatpush.msra.mxu0 0.0
  %133 = vmatpush.msra.mxu0 0.0
  %134 = vmatpush.msra.mxu0 0.0
  %135 = vmatpush.msra.mxu0 0.0
  %136 = vmatpush.msra.mxu0 0.0
  %137 = vmatpush.msra.mxu0 0.0
  %138 = vmatpush.msra.mxu0 0.0
  %139 = vmatpush.msra.mxu0 0.0
  %140 = vmatpush.msra.mxu0 0.0
  %141 = vmatpush.msra.mxu0 0.0
  %142 = vmatpush.msra.mxu0 0.0
  %v143 = vand.u32 %v36, 4294901760
  %144 = vmatpush.msra.mxu0 %v143
  %v145 = vand.u32 %v35, 4294901760
  %146 = vmatpush.msra.mxu0 %v145
  %v147 = vand.u32 %v43, 4294901760
  %v148 = vsub.f32 %v43, %v147
  %v149 = vand.u32 %v148, 4294901760
  %150 = vmatmul.f32.gmra.mxu0 %v149
  %v151 = vpop.f32.mrf.mxu0
  %v152 = vadd.f32 %v127, %v151
  %153 = vdwg.mxu0
  %154 = vmatpush.msra.mxu0 0.0
  %155 = vmatpush.msra.mxu0 0.0
  %156 = vmatpush.msra.mxu0 0.0
  %157 = vmatpush.msra.mxu0 0.0
  %158 = vmatpush.msra.mxu0 0.0
  %159 = vmatpush.msra.mxu0 0.0
  %160 = vmatpush.msra.mxu0 0.0
  %161 = vmatpush.msra.mxu0 0.0
  %162 = vmatpush.msra.mxu0 0.0
  %163 = vmatpush.msra.mxu0 0.0
  %164 = vmatpush.msra.mxu0 0.0
  %165 = vmatpush.msra.mxu0 0.0
  %166 = vmatpush.msra.mxu0 0.0
  %167 = vmatpush.msra.mxu0 0.0
  %v168 = vand.u32 %v36, 4294901760
  %v169 = vsub.f32 %v36, %v168
  %v170 = vand.u32 %v169, 4294901760
  %171 = vmatpush.msra.mxu0 %v170
  %v172 = vand.u32 %v35, 4294901760
  %v173 = vsub.f32 %v35, %v172
  %v174 = vand.u32 %v173, 4294901760
  %175 = vmatpush.msra.mxu0 %v174
  %v176 = vand.u32 %v43, 4294901760
  %177 = vmatmul.f32.gmra.mxu0 %v176
  %v178 = vpop.f32.mrf.mxu0
  %v179 = vadd.f32 %v152, %v178
  %180 = vdwg.mxu0
  %181 = vmatpush.msra.mxu0 0.0
  %182 = vmatpush.msra.mxu0 0.0
  %183 = vmatpush.msra.mxu0 0.0
  %184 = vmatpush.msra.mxu0 0.0
  %185 = vmatpush.msra.mxu0 0.0
  %186 = vmatpush.msra.mxu0 0.0
  %187 = vmatpush.msra.mxu0 0.0
  %188 = vmatpush.msra.mxu0 0.0
  %189 = vmatpush.msra.mxu0 0.0
  %190 = vmatpush.msra.mxu0 0.0
  %191 = vmatpush.msra.mxu0 0.0
  %192 = vmatpush.msra.mxu0 0.0
  %193 = vmatpush.msra.mxu0 0.0
  %194 = vmatpush.msra.mxu0 0.0
  %v195 = vand.u32 %v36, 4294901760
  %196 = vmatpush.msra.mxu0 %v195
  %v197 = vand.u32 %v35, 4294901760
  %198 = vmatpush.msra.mxu0 %v197
  %v199 = vand.u32 %v43, 4294901760
  %200 = vmatmul.f32.gmra.mxu0 %v199
  %v201 = vpop.f32.mrf.mxu0
  %v202 = vadd.f32 %v179, %v201
  %203 = vdwg.mxu0
  %vm204 = vcmp.gt.f32.partialorder %v202, 0.0
  %v205 = vmul.f32 %v202, 0.2
  %v206 = vsel %vm204, %v202, %v205
  %v207 = vld [vmem:[%s3] sm:$0xff]
  %v208 = vld [vmem:[%s3 + $0x8] sm:$0xff]
  %v209 = vld [vmem:[%s3 + $0x10] sm:$0xff]
  %v210 = vld [vmem:[%s3 + $0x18] sm:$0xff]
  %v211 = vld [vmem:[%s3 + $0x20] sm:$0xff]
  %v212 = vld [vmem:[%s3 + $0x28] sm:$0xff]
  %v213 = vld [vmem:[%s3 + $0x30] sm:$0xff]
  %v214 = vld [vmem:[%s3 + $0x38] sm:$0xff]
  %v215 = vld [vmem:[%s3 + $0x40] sm:$0xff]
  %v216 = vld [vmem:[%s3 + $0x48] sm:$0xff]
  %v217 = vld [vmem:[%s3 + $0x50] sm:$0xff]
  %v218 = vld [vmem:[%s3 + $0x58] sm:$0xff]
  %v219 = vld [vmem:[%s3 + $0x60] sm:$0xff]
  %v220 = vld [vmem:[%s3 + $0x68] sm:$0xff]
  %v221 = vld [vmem:[%s3 + $0x70] sm:$0xff]
  %v222 = vld [vmem:[%s3 + $0x78] sm:$0xff]
  %v223 = vld [vmem:[%s4] sm:$0x1]
  %v225 = vperm.slane %v223, 0
  %v227 = vand.u32 %v222, 4294901760
  %228 = vmatpush.msra.mxu0 %v227
  %v229 = vand.u32 %v221, 4294901760
  %230 = vmatpush.msra.mxu0 %v229
  %v231 = vand.u32 %v220, 4294901760
  %232 = vmatpush.msra.mxu0 %v231
  %v233 = vand.u32 %v219, 4294901760
  %234 = vmatpush.msra.mxu0 %v233
  %v235 = vand.u32 %v218, 4294901760
  %236 = vmatpush.msra.mxu0 %v235
  %v237 = vand.u32 %v217, 4294901760
  %238 = vmatpush.msra.mxu0 %v237
  %v239 = vand.u32 %v216, 4294901760
  %240 = vmatpush.msra.mxu0 %v239
  %v241 = vand.u32 %v215, 4294901760
  %242 = vmatpush.msra.mxu0 %v241
  %v243 = vand.u32 %v214, 4294901760
  %244 = vmatpush.msra.mxu0 %v243
  %v245 = vand.u32 %v213, 4294901760
  %246 = vmatpush.msra.mxu0 %v245
  %v247 = vand.u32 %v212, 4294901760
  %248 = vmatpush.msra.mxu0 %v247
  %v249 = vand.u32 %v211, 4294901760
  %250 = vmatpush.msra.mxu0 %v249
  %v251 = vand.u32 %v210, 4294901760
  %252 = vmatpush.msra.mxu0 %v251
  %v253 = vand.u32 %v209, 4294901760
  %254 = vmatpush.msra.mxu0 %v253
  %v255 = vand.u32 %v208, 4294901760
  %256 = vmatpush.msra.mxu0 %v255
  %v257 = vand.u32 %v207, 4294901760
  %258 = vmatpush.msra.mxu0 %v257
  %v259 = vand.u32 %v206, 4294901760
  %v260 = vsub.f32 %v206, %v259
  %v261 = vand.u32 %v260, 4294901760
  %v262 = vsub.f32 %v260, %v261
  %v263 = vand.u32 %v262, 4294901760
  %264 = vmatmul.f32.gmra.mxu0 %v263
  %v265 = vpop.f32.mrf.mxu0
  %v266 = vadd.f32 %v225, %v265
  %267 = vdwg.mxu0
  %v268 = vand.u32 %v222, 4294901760
  %v269 = vsub.f32 %v222, %v268
  %v270 = vand.u32 %v269, 4294901760
  %v271 = vsub.f32 %v269, %v270
  %v272 = vand.u32 %v271, 4294901760
  %273 = vmatpush.msra.mxu0 %v272
  %v274 = vand.u32 %v221, 4294901760
  %v275 = vsub.f32 %v221, %v274
  %v276 = vand.u32 %v275, 4294901760
  %v277 = vsub.f32 %v275, %v276
  %v278 = vand.u32 %v277, 4294901760
  %279 = vmatpush.msra.mxu0 %v278
  %v280 = vand.u32 %v220, 4294901760
  %v281 = vsub.f32 %v220, %v280
  %v282 = vand.u32 %v281, 4294901760
  %v283 = vsub.f32 %v281, %v282
  %v284 = vand.u32 %v283, 4294901760
  %285 = vmatpush.msra.mxu0 %v284
  %v286 = vand.u32 %v219, 4294901760
  %v287 = vsub.f32 %v219, %v286
  %v288 = vand.u32 %v287, 4294901760
  %v289 = vsub.f32 %v287, %v288
  %v290 = vand.u32 %v289, 4294901760
  %291 = vmatpush.msra.mxu0 %v290
  %v292 = vand.u32 %v218, 4294901760
  %v293 = vsub.f32 %v218, %v292
  %v294 = vand.u32 %v293, 4294901760
  %v295 = vsub.f32 %v293, %v294
  %v296 = vand.u32 %v295, 4294901760
  %297 = vmatpush.msra.mxu0 %v296
  %v298 = vand.u32 %v217, 4294901760
  %v299 = vsub.f32 %v217, %v298
  %v300 = vand.u32 %v299, 4294901760
  %v301 = vsub.f32 %v299, %v300
  %v302 = vand.u32 %v301, 4294901760
  %303 = vmatpush.msra.mxu0 %v302
  %v304 = vand.u32 %v216, 4294901760
  %v305 = vsub.f32 %v216, %v304
  %v306 = vand.u32 %v305, 4294901760
  %v307 = vsub.f32 %v305, %v306
  %v308 = vand.u32 %v307, 4294901760
  %309 = vmatpush.msra.mxu0 %v308
  %v310 = vand.u32 %v215, 4294901760
  %v311 = vsub.f32 %v215, %v310
  %v312 = vand.u32 %v311, 4294901760
  %v313 = vsub.f32 %v311, %v312
  %v314 = vand.u32 %v313, 4294901760
  %315 = vmatpush.msra.mxu0 %v314
  %v316 = vand.u32 %v214, 4294901760
  %v317 = vsub.f32 %v214, %v316
  %v318 = vand.u32 %v317, 4294901760
  %v319 = vsub.f32 %v317, %v318
  %v320 = vand.u32 %v319, 4294901760
  %321 = vmatpush.msra.mxu0 %v320
  %v322 = vand.u32 %v213, 4294901760
  %v323 = vsub.f32 %v213, %v322
  %v324 = vand.u32 %v323, 4294901760
  %v325 = vsub.f32 %v323, %v324
  %v326 = vand.u32 %v325, 4294901760
  %327 = vmatpush.msra.mxu0 %v326
  %v328 = vand.u32 %v212, 4294901760
  %v329 = vsub.f32 %v212, %v328
  %v330 = vand.u32 %v329, 4294901760
  %v331 = vsub.f32 %v329, %v330
  %v332 = vand.u32 %v331, 4294901760
  %333 = vmatpush.msra.mxu0 %v332
  %v334 = vand.u32 %v211, 4294901760
  %v335 = vsub.f32 %v211, %v334
  %v336 = vand.u32 %v335, 4294901760
  %v337 = vsub.f32 %v335, %v336
  %v338 = vand.u32 %v337, 4294901760
  %339 = vmatpush.msra.mxu0 %v338
  %v340 = vand.u32 %v210, 4294901760
  %v341 = vsub.f32 %v210, %v340
  %v342 = vand.u32 %v341, 4294901760
  %v343 = vsub.f32 %v341, %v342
  %v344 = vand.u32 %v343, 4294901760
  %345 = vmatpush.msra.mxu0 %v344
  %v346 = vand.u32 %v209, 4294901760
  %v347 = vsub.f32 %v209, %v346
  %v348 = vand.u32 %v347, 4294901760
  %v349 = vsub.f32 %v347, %v348
  %v350 = vand.u32 %v349, 4294901760
  %351 = vmatpush.msra.mxu0 %v350
  %v352 = vand.u32 %v208, 4294901760
  %v353 = vsub.f32 %v208, %v352
  %v354 = vand.u32 %v353, 4294901760
  %v355 = vsub.f32 %v353, %v354
  %v356 = vand.u32 %v355, 4294901760
  %357 = vmatpush.msra.mxu0 %v356
  %v358 = vand.u32 %v207, 4294901760
  %v359 = vsub.f32 %v207, %v358
  %v360 = vand.u32 %v359, 4294901760
  %v361 = vsub.f32 %v359, %v360
  %v362 = vand.u32 %v361, 4294901760
  %363 = vmatpush.msra.mxu0 %v362
  %v364 = vand.u32 %v206, 4294901760
  %365 = vmatmul.f32.gmra.mxu0 %v364
  %v366 = vpop.f32.mrf.mxu0
  %v367 = vadd.f32 %v266, %v366
  %368 = vdwg.mxu0
  %v369 = vand.u32 %v222, 4294901760
  %v370 = vsub.f32 %v222, %v369
  %371 = vmatpush.msra.mxu0 %v370
  %v372 = vand.u32 %v221, 4294901760
  %v373 = vsub.f32 %v221, %v372
  %374 = vmatpush.msra.mxu0 %v373
  %v375 = vand.u32 %v220, 4294901760
  %v376 = vsub.f32 %v220, %v375
  %377 = vmatpush.msra.mxu0 %v376
  %v378 = vand.u32 %v219, 4294901760
  %v379 = vsub.f32 %v219, %v378
  %380 = vmatpush.msra.mxu0 %v379
  %v381 = vand.u32 %v218, 4294901760
  %v382 = vsub.f32 %v218, %v381
  %383 = vmatpush.msra.mxu0 %v382
  %v384 = vand.u32 %v217, 4294901760
  %v385 = vsub.f32 %v217, %v384
  %386 = vmatpush.msra.mxu0 %v385
  %v387 = vand.u32 %v216, 4294901760
  %v388 = vsub.f32 %v216, %v387
  %389 = vmatpush.msra.mxu0 %v388
  %v390 = vand.u32 %v215, 4294901760
  %v391 = vsub.f32 %v215, %v390
  %392 = vmatpush.msra.mxu0 %v391
  %v393 = vand.u32 %v214, 4294901760
  %v394 = vsub.f32 %v214, %v393
  %395 = vmatpush.msra.mxu0 %v394
  %v396 = vand.u32 %v213, 4294901760
  %v397 = vsub.f32 %v213, %v396
  %398 = vmatpush.msra.mxu0 %v397
  %v399 = vand.u32 %v212, 4294901760
  %v400 = vsub.f32 %v212, %v399
  %401 = vmatpush.msra.mxu0 %v400
  %v402 = vand.u32 %v211, 4294901760
  %v403 = vsub.f32 %v211, %v402
  %404 = vmatpush.msra.mxu0 %v403
  %v405 = vand.u32 %v210, 4294901760
  %v406 = vsub.f32 %v210, %v405
  %407 = vmatpush.msra.mxu0 %v406
  %v408 = vand.u32 %v209, 4294901760
  %v409 = vsub.f32 %v209, %v408
  %410 = vmatpush.msra.mxu0 %v409
  %v411 = vand.u32 %v208, 4294901760
  %v412 = vsub.f32 %v208, %v411
  %413 = vmatpush.msra.mxu0 %v412
  %v414 = vand.u32 %v207, 4294901760
  %v415 = vsub.f32 %v207, %v414
  %416 = vmatpush.msra.mxu0 %v415
  %v417 = vand.u32 %v206, 4294901760
  %v418 = vsub.f32 %v206, %v417
  %419 = vmatmul.f32.gmra.mxu0 %v418
  %v420 = vpop.f32.mrf.mxu0
  %v421 = vadd.f32 %v367, %v420
  %422 = vdwg.mxu0
  %v423 = vand.u32 %v222, 4294901760
  %424 = vmatpush.msra.mxu0 %v423
  %v425 = vand.u32 %v221, 4294901760
  %426 = vmatpush.msra.mxu0 %v425
  %v427 = vand.u32 %v220, 4294901760
  %428 = vmatpush.msra.mxu0 %v427
  %v429 = vand.u32 %v219, 4294901760
  %430 = vmatpush.msra.mxu0 %v429
  %v431 = vand.u32 %v218, 4294901760
  %432 = vmatpush.msra.mxu0 %v431
  %v433 = vand.u32 %v217, 4294901760
  %434 = vmatpush.msra.mxu0 %v433
  %v435 = vand.u32 %v216, 4294901760
  %436 = vmatpush.msra.mxu0 %v435
  %v437 = vand.u32 %v215, 4294901760
  %438 = vmatpush.msra.mxu0 %v437
  %v439 = vand.u32 %v214, 4294901760
  %440 = vmatpush.msra.mxu0 %v439
  %v441 = vand.u32 %v213, 4294901760
  %442 = vmatpush.msra.mxu0 %v441
  %v443 = vand.u32 %v212, 4294901760
  %444 = vmatpush.msra.mxu0 %v443
  %v445 = vand.u32 %v211, 4294901760
  %446 = vmatpush.msra.mxu0 %v445
  %v447 = vand.u32 %v210, 4294901760
  %448 = vmatpush.msra.mxu0 %v447
  %v449 = vand.u32 %v209, 4294901760
  %450 = vmatpush.msra.mxu0 %v449
  %v451 = vand.u32 %v208, 4294901760
  %452 = vmatpush.msra.mxu0 %v451
  %v453 = vand.u32 %v207, 4294901760
  %454 = vmatpush.msra.mxu0 %v453
  %v455 = vand.u32 %v206, 4294901760
  %v456 = vsub.f32 %v206, %v455
  %v457 = vand.u32 %v456, 4294901760
  %458 = vmatmul.f32.gmra.mxu0 %v457
  %v459 = vpop.f32.mrf.mxu0
  %v460 = vadd.f32 %v421, %v459
  %461 = vdwg.mxu0
  %v462 = vand.u32 %v222, 4294901760
  %v463 = vsub.f32 %v222, %v462
  %v464 = vand.u32 %v463, 4294901760
  %465 = vmatpush.msra.mxu0 %v464
  %v466 = vand.u32 %v221, 4294901760
  %v467 = vsub.f32 %v221, %v466
  %v468 = vand.u32 %v467, 4294901760
  %469 = vmatpush.msra.mxu0 %v468
  %v470 = vand.u32 %v220, 4294901760
  %v471 = vsub.f32 %v220, %v470
  %v472 = vand.u32 %v471, 4294901760
  %473 = vmatpush.msra.mxu0 %v472
  %v474 = vand.u32 %v219, 4294901760
  %v475 = vsub.f32 %v219, %v474
  %v476 = vand.u32 %v475, 4294901760
  %477 = vmatpush.msra.mxu0 %v476
  %v478 = vand.u32 %v218, 4294901760
  %v479 = vsub.f32 %v218, %v478
  %v480 = vand.u32 %v479, 4294901760
  %481 = vmatpush.msra.mxu0 %v480
  %v482 = vand.u32 %v217, 4294901760
  %v483 = vsub.f32 %v217, %v482
  %v484 = vand.u32 %v483, 4294901760
  %485 = vmatpush.msra.mxu0 %v484
  %v486 = vand.u32 %v216, 4294901760
  %v487 = vsub.f32 %v216, %v486
  %v488 = vand.u32 %v487, 4294901760
  %489 = vmatpush.msra.mxu0 %v488
  %v490 = vand.u32 %v215, 4294901760
  %v491 = vsub.f32 %v215, %v490
  %v492 = vand.u32 %v491, 4294901760
  %493 = vmatpush.msra.mxu0 %v492
  %v494 = vand.u32 %v214, 4294901760
  %v495 = vsub.f32 %v214, %v494
  %v496 = vand.u32 %v495, 4294901760
  %497 = vmatpush.msra.mxu0 %v496
  %v498 = vand.u32 %v213, 4294901760
  %v499 = vsub.f32 %v213, %v498
  %v500 = vand.u32 %v499, 4294901760
  %501 = vmatpush.msra.mxu0 %v500
  %v502 = vand.u32 %v212, 4294901760
  %v503 = vsub.f32 %v212, %v502
  %v504 = vand.u32 %v503, 4294901760
  %505 = vmatpush.msra.mxu0 %v504
  %v506 = vand.u32 %v211, 4294901760
  %v507 = vsub.f32 %v211, %v506
  %v508 = vand.u32 %v507, 4294901760
  %509 = vmatpush.msra.mxu0 %v508
  %v510 = vand.u32 %v210, 4294901760
  %v511 = vsub.f32 %v210, %v510
  %v512 = vand.u32 %v511, 4294901760
  %513 = vmatpush.msra.mxu0 %v512
  %v514 = vand.u32 %v209, 4294901760
  %v515 = vsub.f32 %v209, %v514
  %v516 = vand.u32 %v515, 4294901760
  %517 = vmatpush.msra.mxu0 %v516
  %v518 = vand.u32 %v208, 4294901760
  %v519 = vsub.f32 %v208, %v518
  %v520 = vand.u32 %v519, 4294901760
  %521 = vmatpush.msra.mxu0 %v520
  %v522 = vand.u32 %v207, 4294901760
  %v523 = vsub.f32 %v207, %v522
  %v524 = vand.u32 %v523, 4294901760
  %525 = vmatpush.msra.mxu0 %v524
  %v526 = vand.u32 %v206, 4294901760
  %527 = vmatmul.f32.gmra.mxu0 %v526
  %v528 = vpop.f32.mrf.mxu0
  %v529 = vadd.f32 %v460, %v528
  %530 = vdwg.mxu0
  %v531 = vand.u32 %v222, 4294901760
  %532 = vmatpush.msra.mxu0 %v531
  %v533 = vand.u32 %v221, 4294901760
  %534 = vmatpush.msra.mxu0 %v533
  %v535 = vand.u32 %v220, 4294901760
  %536 = vmatpush.msra.mxu0 %v535
  %v537 = vand.u32 %v219, 4294901760
  %538 = vmatpush.msra.mxu0 %v537
  %v539 = vand.u32 %v218, 4294901760
  %540 = vmatpush.msra.mxu0 %v539
  %v541 = vand.u32 %v217, 4294901760
  %542 = vmatpush.msra.mxu0 %v541
  %v543 = vand.u32 %v216, 4294901760
  %544 = vmatpush.msra.mxu0 %v543
  %v545 = vand.u32 %v215, 4294901760
  %546 = vmatpush.msra.mxu0 %v545
  %v547 = vand.u32 %v214, 4294901760
  %548 = vmatpush.msra.mxu0 %v547
  %v549 = vand.u32 %v213, 4294901760
  %550 = vmatpush.msra.mxu0 %v549
  %v551 = vand.u32 %v212, 4294901760
  %552 = vmatpush.msra.mxu0 %v551
  %v553 = vand.u32 %v211, 4294901760
  %554 = vmatpush.msra.mxu0 %v553
  %v555 = vand.u32 %v210, 4294901760
  %556 = vmatpush.msra.mxu0 %v555
  %v557 = vand.u32 %v209, 4294901760
  %558 = vmatpush.msra.mxu0 %v557
  %v559 = vand.u32 %v208, 4294901760
  %560 = vmatpush.msra.mxu0 %v559
  %v561 = vand.u32 %v207, 4294901760
  %562 = vmatpush.msra.mxu0 %v561
  %v563 = vand.u32 %v206, 4294901760
  %564 = vmatmul.f32.gmra.mxu0 %v563
  %v565 = vpop.f32.mrf.mxu0
  %v566 = vadd.f32 %v529, %v565
  %567 = vdwg.mxu0
  %vm568 = vcmp.gt.f32.partialorder %v566, 0.0
  %v569 = vmul.f32 %v566, 0.2
  %v570 = vsel %vm568, %v566, %v569
  %v571 = vld [vmem:[%s5] sm:$0xff]
  %v572 = vld [vmem:[%s5 + $0x8] sm:$0xff]
  %v573 = vld [vmem:[%s5 + $0x10] sm:$0xff]
  %v574 = vld [vmem:[%s5 + $0x18] sm:$0xff]
  %v575 = vld [vmem:[%s5 + $0x20] sm:$0xff]
  %v576 = vld [vmem:[%s5 + $0x28] sm:$0xff]
  %v577 = vld [vmem:[%s5 + $0x30] sm:$0xff]
  %v578 = vld [vmem:[%s5 + $0x38] sm:$0xff]
  %v579 = vld [vmem:[%s6] sm:$0x1]
  %v581 = vperm.slane %v579, 0
  %vm583 = vcmask 523264
  %v585 = vsel %vm583, %v570, 0
  %587 = vmatpush.msra.mxu0 0.0
  %588 = vmatpush.msra.mxu0 0.0
  %589 = vmatpush.msra.mxu0 0.0
  %590 = vmatpush.msra.mxu0 0.0
  %591 = vmatpush.msra.mxu0 0.0
  %592 = vmatpush.msra.mxu0 0.0
  %593 = vmatpush.msra.mxu0 0.0
  %594 = vmatpush.msra.mxu0 0.0
  %v595 = vand.u32 %v578, 4294901760
  %596 = vmatpush.msra.mxu0 %v595
  %v597 = vand.u32 %v577, 4294901760
  %598 = vmatpush.msra.mxu0 %v597
  %v599 = vand.u32 %v576, 4294901760
  %600 = vmatpush.msra.mxu0 %v599
  %v601 = vand.u32 %v575, 4294901760
  %602 = vmatpush.msra.mxu0 %v601
  %v603 = vand.u32 %v574, 4294901760
  %604 = vmatpush.msra.mxu0 %v603
  %v605 = vand.u32 %v573, 4294901760
  %606 = vmatpush.msra.mxu0 %v605
  %v607 = vand.u32 %v572, 4294901760
  %608 = vmatpush.msra.mxu0 %v607
  %v609 = vand.u32 %v571, 4294901760
  %610 = vmatpush.msra.mxu0 %v609
  %v611 = vand.u32 %v585, 4294901760
  %v612 = vsub.f32 %v585, %v611
  %v613 = vand.u32 %v612, 4294901760
  %v614 = vsub.f32 %v612, %v613
  %v615 = vand.u32 %v614, 4294901760
  %616 = vmatmul.f32.gmra.mxu0 %v615
  %v617 = vpop.f32.mrf.mxu0
  %v618 = vadd.f32 %v581, %v617
  %619 = vdwg.mxu0
  %620 = vmatpush.msra.mxu0 0.0
  %621 = vmatpush.msra.mxu0 0.0
  %622 = vmatpush.msra.mxu0 0.0
  %623 = vmatpush.msra.mxu0 0.0
  %624 = vmatpush.msra.mxu0 0.0
  %625 = vmatpush.msra.mxu0 0.0
  %626 = vmatpush.msra.mxu0 0.0
  %627 = vmatpush.msra.mxu0 0.0
  %v628 = vand.u32 %v578, 4294901760
  %v629 = vsub.f32 %v578, %v628
  %v630 = vand.u32 %v629, 4294901760
  %v631 = vsub.f32 %v629, %v630
  %v632 = vand.u32 %v631, 4294901760
  %633 = vmatpush.msra.mxu0 %v632
  %v634 = vand.u32 %v577, 4294901760
  %v635 = vsub.f32 %v577, %v634
  %v636 = vand.u32 %v635, 4294901760
  %v637 = vsub.f32 %v635, %v636
  %v638 = vand.u32 %v637, 4294901760
  %639 = vmatpush.msra.mxu0 %v638
  %v640 = vand.u32 %v576, 4294901760
  %v641 = vsub.f32 %v576, %v640
  %v642 = vand.u32 %v641, 4294901760
  %v643 = vsub.f32 %v641, %v642
  %v644 = vand.u32 %v643, 4294901760
  %645 = vmatpush.msra.mxu0 %v644
  %v646 = vand.u32 %v575, 4294901760
  %v647 = vsub.f32 %v575, %v646
  %v648 = vand.u32 %v647, 4294901760
  %v649 = vsub.f32 %v647, %v648
  %v650 = vand.u32 %v649, 4294901760
  %651 = vmatpush.msra.mxu0 %v650
  %v652 = vand.u32 %v574, 4294901760
  %v653 = vsub.f32 %v574, %v652
  %v654 = vand.u32 %v653, 4294901760
  %v655 = vsub.f32 %v653, %v654
  %v656 = vand.u32 %v655, 4294901760
  %657 = vmatpush.msra.mxu0 %v656
  %v658 = vand.u32 %v573, 4294901760
  %v659 = vsub.f32 %v573, %v658
  %v660 = vand.u32 %v659, 4294901760
  %v661 = vsub.f32 %v659, %v660
  %v662 = vand.u32 %v661, 4294901760
  %663 = vmatpush.msra.mxu0 %v662
  %v664 = vand.u32 %v572, 4294901760
  %v665 = vsub.f32 %v572, %v664
  %v666 = vand.u32 %v665, 4294901760
  %v667 = vsub.f32 %v665, %v666
  %v668 = vand.u32 %v667, 4294901760
  %669 = vmatpush.msra.mxu0 %v668
  %v670 = vand.u32 %v571, 4294901760
  %v671 = vsub.f32 %v571, %v670
  %v672 = vand.u32 %v671, 4294901760
  %v673 = vsub.f32 %v671, %v672
  %v674 = vand.u32 %v673, 4294901760
  %675 = vmatpush.msra.mxu0 %v674
  %v676 = vand.u32 %v585, 4294901760
  %677 = vmatmul.f32.gmra.mxu0 %v676
  %v678 = vpop.f32.mrf.mxu0
  %v679 = vadd.f32 %v618, %v678
  %680 = vdwg.mxu0
  %681 = vmatpush.msra.mxu0 0.0
  %682 = vmatpush.msra.mxu0 0.0
  %683 = vmatpush.msra.mxu0 0.0
  %684 = vmatpush.msra.mxu0 0.0
  %685 = vmatpush.msra.mxu0 0.0
  %686 = vmatpush.msra.mxu0 0.0
  %687 = vmatpush.msra.mxu0 0.0
  %688 = vmatpush.msra.mxu0 0.0
  %v689 = vand.u32 %v578, 4294901760
  %v690 = vsub.f32 %v578, %v689
  %691 = vmatpush.msra.mxu0 %v690
  %v692 = vand.u32 %v577, 4294901760
  %v693 = vsub.f32 %v577, %v692
  %694 = vmatpush.msra.mxu0 %v693
  %v695 = vand.u32 %v576, 4294901760
  %v696 = vsub.f32 %v576, %v695
  %697 = vmatpush.msra.mxu0 %v696
  %v698 = vand.u32 %v575, 4294901760
  %v699 = vsub.f32 %v575, %v698
  %700 = vmatpush.msra.mxu0 %v699
  %v701 = vand.u32 %v574, 4294901760
  %v702 = vsub.f32 %v574, %v701
  %703 = vmatpush.msra.mxu0 %v702
  %v704 = vand.u32 %v573, 4294901760
  %v705 = vsub.f32 %v573, %v704
  %706 = vmatpush.msra.mxu0 %v705
  %v707 = vand.u32 %v572, 4294901760
  %v708 = vsub.f32 %v572, %v707
  %709 = vmatpush.msra.mxu0 %v708
  %v710 = vand.u32 %v571, 4294901760
  %v711 = vsub.f32 %v571, %v710
  %712 = vmatpush.msra.mxu0 %v711
  %v713 = vand.u32 %v585, 4294901760
  %v714 = vsub.f32 %v585, %v713
  %715 = vmatmul.f32.gmra.mxu0 %v714
  %v716 = vpop.f32.mrf.mxu0
  %v717 = vadd.f32 %v679, %v716
  %718 = vdwg.mxu0
  %719 = vmatpush.msra.mxu0 0.0
  %720 = vmatpush.msra.mxu0 0.0
  %721 = vmatpush.msra.mxu0 0.0
  %722 = vmatpush.msra.mxu0 0.0
  %723 = vmatpush.msra.mxu0 0.0
  %724 = vmatpush.msra.mxu0 0.0
  %725 = vmatpush.msra.mxu0 0.0
  %726 = vmatpush.msra.mxu0 0.0
  %v727 = vand.u32 %v578, 4294901760
  %728 = vmatpush.msra.mxu0 %v727
  %v729 = vand.u32 %v577, 4294901760
  %730 = vmatpush.msra.mxu0 %v729
  %v731 = vand.u32 %v576, 4294901760
  %732 = vmatpush.msra.mxu0 %v731
  %v733 = vand.u32 %v575, 4294901760
  %734 = vmatpush.msra.mxu0 %v733
  %v735 = vand.u32 %v574, 4294901760
  %736 = vmatpush.msra.mxu0 %v735
  %v737 = vand.u32 %v573, 4294901760
  %738 = vmatpush.msra.mxu0 %v737
  %v739 = vand.u32 %v572, 4294901760
  %740 = vmatpush.msra.mxu0 %v739
  %v741 = vand.u32 %v571, 4294901760
  %742 = vmatpush.msra.mxu0 %v741
  %v743 = vand.u32 %v585, 4294901760
  %v744 = vsub.f32 %v585, %v743
  %v745 = vand.u32 %v744, 4294901760
  %746 = vmatmul.f32.gmra.mxu0 %v745
  %v747 = vpop.f32.mrf.mxu0
  %v748 = vadd.f32 %v717, %v747
  %749 = vdwg.mxu0
  %750 = vmatpush.msra.mxu0 0.0
  %751 = vmatpush.msra.mxu0 0.0
  %752 = vmatpush.msra.mxu0 0.0
  %753 = vmatpush.msra.mxu0 0.0
  %754 = vmatpush.msra.mxu0 0.0
  %755 = vmatpush.msra.mxu0 0.0
  %756 = vmatpush.msra.mxu0 0.0
  %757 = vmatpush.msra.mxu0 0.0
  %v758 = vand.u32 %v578, 4294901760
  %v759 = vsub.f32 %v578, %v758
  %v760 = vand.u32 %v759, 4294901760
  %761 = vmatpush.msra.mxu0 %v760
  %v762 = vand.u32 %v577, 4294901760
  %v763 = vsub.f32 %v577, %v762
  %v764 = vand.u32 %v763, 4294901760
  %765 = vmatpush.msra.mxu0 %v764
  %v766 = vand.u32 %v576, 4294901760
  %v767 = vsub.f32 %v576, %v766
  %v768 = vand.u32 %v767, 4294901760
  %769 = vmatpush.msra.mxu0 %v768
  %v770 = vand.u32 %v575, 4294901760
  %v771 = vsub.f32 %v575, %v770
  %v772 = vand.u32 %v771, 4294901760
  %773 = vmatpush.msra.mxu0 %v772
  %v774 = vand.u32 %v574, 4294901760
  %v775 = vsub.f32 %v574, %v774
  %v776 = vand.u32 %v775, 4294901760
  %777 = vmatpush.msra.mxu0 %v776
  %v778 = vand.u32 %v573, 4294901760
  %v779 = vsub.f32 %v573, %v778
  %v780 = vand.u32 %v779, 4294901760
  %781 = vmatpush.msra.mxu0 %v780
  %v782 = vand.u32 %v572, 4294901760
  %v783 = vsub.f32 %v572, %v782
  %v784 = vand.u32 %v783, 4294901760
  %785 = vmatpush.msra.mxu0 %v784
  %v786 = vand.u32 %v571, 4294901760
  %v787 = vsub.f32 %v571, %v786
  %v788 = vand.u32 %v787, 4294901760
  %789 = vmatpush.msra.mxu0 %v788
  %v790 = vand.u32 %v585, 4294901760
  %791 = vmatmul.f32.gmra.mxu0 %v790
  %v792 = vpop.f32.mrf.mxu0
  %v793 = vadd.f32 %v748, %v792
  %794 = vdwg.mxu0
  %795 = vmatpush.msra.mxu0 0.0
  %796 = vmatpush.msra.mxu0 0.0
  %797 = vmatpush.msra.mxu0 0.0
  %798 = vmatpush.msra.mxu0 0.0
  %799 = vmatpush.msra.mxu0 0.0
  %800 = vmatpush.msra.mxu0 0.0
  %801 = vmatpush.msra.mxu0 0.0
  %802 = vmatpush.msra.mxu0 0.0
  %v803 = vand.u32 %v578, 4294901760
  %804 = vmatpush.msra.mxu0 %v803
  %v805 = vand.u32 %v577, 4294901760
  %806 = vmatpush.msra.mxu0 %v805
  %v807 = vand.u32 %v576, 4294901760
  %808 = vmatpush.msra.mxu0 %v807
  %v809 = vand.u32 %v575, 4294901760
  %810 = vmatpush.msra.mxu0 %v809
  %v811 = vand.u32 %v574, 4294901760
  %812 = vmatpush.msra.mxu0 %v811
  %v813 = vand.u32 %v573, 4294901760
  %814 = vmatpush.msra.mxu0 %v813
  %v815 = vand.u32 %v572, 4294901760
  %816 = vmatpush.msra.mxu0 %v815
  %v817 = vand.u32 %v571, 4294901760
  %818 = vmatpush.msra.mxu0 %v817
  %v819 = vand.u32 %v585, 4294901760
  %820 = vmatmul.f32.gmra.mxu0 %v819
  %v821 = vpop.f32.mrf.mxu0
  %v822 = vadd.f32 %v793, %v821
  %823 = vdwg.mxu0
  %vm824 = vcmp.gt.f32.partialorder %v822, 0.0
  %v825 = vmul.f32 %v822, 0.2
  %v826 = vsel %vm824, %v822, %v825
  %v827 = vld [vmem:[%s7] sm:$0xff]
  %v828 = vld [vmem:[%s7 + $0x8] sm:$0xff]
  %v829 = vld [vmem:[%s7 + $0x10] sm:$0xff]
  %v830 = vld [vmem:[%s7 + $0x18] sm:$0xff]
  %v831 = vld [vmem:[#allocation2] sm:$0x1]
  %v833 = vperm.slane %v831, 0
  %vm835 = vcmask 261120
  %v837 = vsel %vm835, %v826, 0
  %839 = vmatpush.msra.mxu0 0.0
  %840 = vmatpush.msra.mxu0 0.0
  %841 = vmatpush.msra.mxu0 0.0
  %842 = vmatpush.msra.mxu0 0.0
  %843 = vmatpush.msra.mxu0 0.0
  %844 = vmatpush.msra.mxu0 0.0
  %845 = vmatpush.msra.mxu0 0.0
  %846 = vmatpush.msra.mxu0 0.0
  %847 = vmatpush.msra.mxu0 0.0
  %848 = vmatpush.msra.mxu0 0.0
  %849 = vmatpush.msra.mxu0 0.0
  %850 = vmatpush.msra.mxu0 0.0
  %v851 = vand.u32 %v830, 4294901760
  %852 = vmatpush.msra.mxu0 %v851
  %v853 = vand.u32 %v829, 4294901760
  %854 = vmatpush.msra.mxu0 %v853
  %v855 = vand.u32 %v828, 4294901760
  %856 = vmatpush.msra.mxu0 %v855
  %v857 = vand.u32 %v827, 4294901760
  %858 = vmatpush.msra.mxu0 %v857
  %v859 = vand.u32 %v837, 4294901760
  %v860 = vsub.f32 %v837, %v859
  %v861 = vand.u32 %v860, 4294901760
  %v862 = vsub.f32 %v860, %v861
  %v863 = vand.u32 %v862, 4294901760
  %864 = vmatmul.f32.gmra.mxu0 %v863
  %v865 = vpop.f32.mrf.mxu0
  %v866 = vadd.f32 %v833, %v865
  %867 = vdwg.mxu0
  %868 = vmatpush.msra.mxu0 0.0
  %869 = vmatpush.msra.mxu0 0.0
  %870 = vmatpush.msra.mxu0 0.0
  %871 = vmatpush.msra.mxu0 0.0
  %872 = vmatpush.msra.mxu0 0.0
  %873 = vmatpush.msra.mxu0 0.0
  %874 = vmatpush.msra.mxu0 0.0
  %875 = vmatpush.msra.mxu0 0.0
  %876 = vmatpush.msra.mxu0 0.0
  %877 = vmatpush.msra.mxu0 0.0
  %878 = vmatpush.msra.mxu0 0.0
  %879 = vmatpush.msra.mxu0 0.0
  %v880 = vand.u32 %v830, 4294901760
  %v881 = vsub.f32 %v830, %v880
  %v882 = vand.u32 %v881, 4294901760
  %v883 = vsub.f32 %v881, %v882
  %v884 = vand.u32 %v883, 4294901760
  %885 = vmatpush.msra.mxu0 %v884
  %v886 = vand.u32 %v829, 4294901760
  %v887 = vsub.f32 %v829, %v886
  %v888 = vand.u32 %v887, 4294901760
  %v889 = vsub.f32 %v887, %v888
  %v890 = vand.u32 %v889, 4294901760
  %891 = vmatpush.msra.mxu0 %v890
  %v892 = vand.u32 %v828, 4294901760
  %v893 = vsub.f32 %v828, %v892
  %v894 = vand.u32 %v893, 4294901760
  %v895 = vsub.f32 %v893, %v894
  %v896 = vand.u32 %v895, 4294901760
  %897 = vmatpush.msra.mxu0 %v896
  %v898 = vand.u32 %v827, 4294901760
  %v899 = vsub.f32 %v827, %v898
  %v900 = vand.u32 %v899, 4294901760
  %v901 = vsub.f32 %v899, %v900
  %v902 = vand.u32 %v901, 4294901760
  %903 = vmatpush.msra.mxu0 %v902
  %v904 = vand.u32 %v837, 4294901760
  %905 = vmatmul.f32.gmra.mxu0 %v904
  %v906 = vpop.f32.mrf.mxu0
  %v907 = vadd.f32 %v866, %v906
  %908 = vdwg.mxu0
  %909 = vmatpush.msra.mxu0 0.0
  %910 = vmatpush.msra.mxu0 0.0
  %911 = vmatpush.msra.mxu0 0.0
  %912 = vmatpush.msra.mxu0 0.0
  %913 = vmatpush.msra.mxu0 0.0
  %914 = vmatpush.msra.mxu0 0.0
  %915 = vmatpush.msra.mxu0 0.0
  %916 = vmatpush.msra.mxu0 0.0
  %917 = vmatpush.msra.mxu0 0.0
  %918 = vmatpush.msra.mxu0 0.0
  %919 = vmatpush.msra.mxu0 0.0
  %920 = vmatpush.msra.mxu0 0.0
  %v921 = vand.u32 %v830, 4294901760
  %v922 = vsub.f32 %v830, %v921
  %923 = vmatpush.msra.mxu0 %v922
  %v924 = vand.u32 %v829, 4294901760
  %v925 = vsub.f32 %v829, %v924
  %926 = vmatpush.msra.mxu0 %v925
  %v927 = vand.u32 %v828, 4294901760
  %v928 = vsub.f32 %v828, %v927
  %929 = vmatpush.msra.mxu0 %v928
  %v930 = vand.u32 %v827, 4294901760
  %v931 = vsub.f32 %v827, %v930
  %932 = vmatpush.msra.mxu0 %v931
  %v933 = vand.u32 %v837, 4294901760
  %v934 = vsub.f32 %v837, %v933
  %935 = vmatmul.f32.gmra.mxu0 %v934
  %v936 = vpop.f32.mrf.mxu0
  %v937 = vadd.f32 %v907, %v936
  %938 = vdwg.mxu0
  %939 = vmatpush.msra.mxu0 0.0
  %940 = vmatpush.msra.mxu0 0.0
  %941 = vmatpush.msra.mxu0 0.0
  %942 = vmatpush.msra.mxu0 0.0
  %943 = vmatpush.msra.mxu0 0.0
  %944 = vmatpush.msra.mxu0 0.0
  %945 = vmatpush.msra.mxu0 0.0
  %946 = vmatpush.msra.mxu0 0.0
  %947 = vmatpush.msra.mxu0 0.0
  %948 = vmatpush.msra.mxu0 0.0
  %949 = vmatpush.msra.mxu0 0.0
  %950 = vmatpush.msra.mxu0 0.0
  %v951 = vand.u32 %v830, 4294901760
  %952 = vmatpush.msra.mxu0 %v951
  %v953 = vand.u32 %v829, 4294901760
  %954 = vmatpush.msra.mxu0 %v953
  %v955 = vand.u32 %v828, 4294901760
  %956 = vmatpush.msra.mxu0 %v955
  %v957 = vand.u32 %v827, 4294901760
  %958 = vmatpush.msra.mxu0 %v957
  %v959 = vand.u32 %v837, 4294901760
  %v960 = vsub.f32 %v837, %v959
  %v961 = vand.u32 %v960, 4294901760
  %962 = vmatmul.f32.gmra.mxu0 %v961
  %v963 = vpop.f32.mrf.mxu0
  %v964 = vadd.f32 %v937, %v963
  %965 = vdwg.mxu0
  %966 = vmatpush.msra.mxu0 0.0
  %967 = vmatpush.msra.mxu0 0.0
  %968 = vmatpush.msra.mxu0 0.0
  %969 = vmatpush.msra.mxu0 0.0
  %970 = vmatpush.msra.mxu0 0.0
  %971 = vmatpush.msra.mxu0 0.0
  %972 = vmatpush.msra.mxu0 0.0
  %973 = vmatpush.msra.mxu0 0.0
  %974 = vmatpush.msra.mxu0 0.0
  %975 = vmatpush.msra.mxu0 0.0
  %976 = vmatpush.msra.mxu0 0.0
  %977 = vmatpush.msra.mxu0 0.0
  %v978 = vand.u32 %v830, 4294901760
  %v979 = vsub.f32 %v830, %v978
  %v980 = vand.u32 %v979, 4294901760
  %981 = vmatpush.msra.mxu0 %v980
  %v982 = vand.u32 %v829, 4294901760
  %v983 = vsub.f32 %v829, %v982
  %v984 = vand.u32 %v983, 4294901760
  %985 = vmatpush.msra.mxu0 %v984
  %v986 = vand.u32 %v828, 4294901760
  %v987 = vsub.f32 %v828, %v986
  %v988 = vand.u32 %v987, 4294901760
  %989 = vmatpush.msra.mxu0 %v988
  %v990 = vand.u32 %v827, 4294901760
  %v991 = vsub.f32 %v827, %v990
  %v992 = vand.u32 %v991, 4294901760
  %993 = vmatpush.msra.mxu0 %v992
  %v994 = vand.u32 %v837, 4294901760
  %995 = vmatmul.f32.gmra.mxu0 %v994
  %v996 = vpop.f32.mrf.mxu0
  %v997 = vadd.f32 %v964, %v996
  %998 = vdwg.mxu0
  %999 = vmatpush.msra.mxu0 0.0
  %1000 = vmatpush.msra.mxu0 0.0
  %1001 = vmatpush.msra.mxu0 0.0
  %1002 = vmatpush.msra.mxu0 0.0
  %1003 = vmatpush.msra.mxu0 0.0
  %1004 = vmatpush.msra.mxu0 0.0
  %1005 = vmatpush.msra.mxu0 0.0
  %1006 = vmatpush.msra.mxu0 0.0
  %1007 = vmatpush.msra.mxu0 0.0
  %1008 = vmatpush.msra.mxu0 0.0
  %1009 = vmatpush.msra.mxu0 0.0
  %1010 = vmatpush.msra.mxu0 0.0
  %v1011 = vand.u32 %v830, 4294901760
  %1012 = vmatpush.msra.mxu0 %v1011
  %v1013 = vand.u32 %v829, 4294901760
  %1014 = vmatpush.msra.mxu0 %v1013
  %v1015 = vand.u32 %v828, 4294901760
  %1016 = vmatpush.msra.mxu0 %v1015
  %v1017 = vand.u32 %v827, 4294901760
  %1018 = vmatpush.msra.mxu0 %v1017
  %v1019 = vand.u32 %v837, 4294901760
  %1020 = vmatmul.f32.gmra.mxu0 %v1019
  %v1021 = vpop.f32.mrf.mxu0
  %v1022 = vadd.f32 %v997, %v1021
  %1023 = vdwg.mxu0
  %vm1024 = vcmask 7168
  %1025 = vst.msk [vmem:[%s9] sm:$0xff] %vm1024, %v1022
  // Predicated region
  $region38: #{tpu_custom_call.1} parent=0 // pred_check
    _
  $region39: #{tpu_custom_call.1} parent=0 // pred_check_branch
    %1027 = sbr.rel (0) target = $region41
  $region40: #{tpu_custom_call.1} parent=0 // pred_region
    _
  $region41: #{tpu_custom_call.1} parent=0 // pred_fallthru
    _
  // Predicated region
  $region42: #{tpu_custom_call.1} parent=0 // pred_check
    _
  $region43: #{tpu_custom_call.1} parent=0 // pred_check_branch
    %1029 = sbr.rel (0) target = $region45
  $region44: #{tpu_custom_call.1} parent=0 // pred_region
    _
  $region45: #{tpu_custom_call.1} parent=0 // pred_fallthru
    _

</llo_original>
